<compile_context>
chip_gen: v7x
topology: tpu7x:2x2x1
jax: 0.10.0
libtpu: 0.0.40
codegen_flags: <defaults>
</compile_context>

<pallas_src>
import math

import jax
import jax.numpy as jnp
from jax.experimental import pallas as pl
from jax.experimental.pallas import tpu as pltpu


IN_FEATURES = 28 * 28   # 784
HIDDEN = 200


def _round_up(x, m):
    return (x + m - 1) // m * m


# ------------------------------- Pallas kernels ------------------------------

def _mlp_compute(x_ref, w1_ref, b1_ref, w2_ref, b2_ref, w3_ref, b3_ref):
    # x_ref:  (TM, 784) bf16     w1_ref: (784, Hp) bf16   b1_ref: (1, Hp) f32
    # w2_ref: (Hp, Hp)  bf16     b2_ref: (1, Hp)  f32
    # w3_ref: (Hp, Cp)  bf16     b3_ref: (1, Cp)  f32
    # bf16 operands on the MXU, f32 accumulation + bias + ReLU.
    x = x_ref[...]
    h = jnp.dot(x, w1_ref[...], preferred_element_type=jnp.float32) + b1_ref[...]
    h = jnp.maximum(h, 0.0)
    z = jnp.dot(h.astype(jnp.bfloat16), w2_ref[...],
                preferred_element_type=jnp.float32) + b2_ref[...]
    z = jnp.maximum(z, 0.0)
    y = jnp.dot(z.astype(jnp.bfloat16), w3_ref[...],
                preferred_element_type=jnp.float32) + b3_ref[...]
    return y, z


def _mlp_kernel(x_ref, w1_ref, b1_ref, w2_ref, b2_ref, w3_ref, b3_ref, out_ref):
    y, _ = _mlp_compute(x_ref, w1_ref, b1_ref, w2_ref, b2_ref, w3_ref, b3_ref)
    out_ref[...] = y.astype(out_ref.dtype)


def _mlp_kernel_with_z(x_ref, w1_ref, b1_ref, w2_ref, b2_ref, w3_ref, b3_ref,
                       out_ref, z_ref):
    y, z = _mlp_compute(x_ref, w1_ref, b1_ref, w2_ref, b2_ref, w3_ref, b3_ref)
    out_ref[...] = y.astype(out_ref.dtype)
    z_ref[...] = z.astype(z_ref.dtype)


# ------------------------------ forward wrapper ------------------------------

def _pick_tm(B, tm_max):
    # Multiple of 16 rows (bf16 sublane packing); never bigger than the batch
    # rounded up to 16.
    tm = max(16, min(tm_max, _round_up(B, 16)))
    # Keep >= 2 grid steps when the batch allows, so the "parallel" batch axis
    # can shard across both TensorCores on megacore (v7x) chips.
    if B > 16 and pl.cdiv(B, tm) < 2:
        tm = max(16, _round_up(pl.cdiv(B, 2), 16))
    return tm


def mnist_mlp_forward(x, params, return_z=False, tm=512):
    """x: (B, ...) flattening to 784 features (e.g. (B, 1, 28, 28))."""
    B = x.shape[0]
    xf = x.reshape(B, -1).astype(jnp.bfloat16)   # bf16 MXU operand; no K pad
    assert xf.shape[1] == IN_FEATURES

    num_classes = params["num_classes"]
    Hp = params["w2p"].shape[0]    # 256
    Cp = params["w3p"].shape[1]    # 128

    tm = _pick_tm(B, tm)
    grid = (pl.cdiv(B, tm),)

    # Boundary grid block may read past the end of x (rows are independent, so
    # garbage rows never contaminate valid ones) and its out-of-bounds output
    # rows are dropped on writeback -> no host-side batch pad/copy needed.
    x_spec = pl.BlockSpec((tm, IN_FEATURES), lambda m: (m, 0))

    # Weights/biases are grid-invariant: constant index maps keep them
    # VMEM-resident across every grid step.
    w_specs = [
        pl.BlockSpec((IN_FEATURES, Hp), lambda m: (0, 0)),   # w1 (bf16)
        pl.BlockSpec((1, Hp), lambda m: (0, 0)),             # b1 (f32)
        pl.BlockSpec((Hp, Hp), lambda m: (0, 0)),            # w2 (bf16)
        pl.BlockSpec((1, Hp), lambda m: (0, 0)),             # b2 (f32)
        pl.BlockSpec((Hp, Cp), lambda m: (0, 0)),            # w3 (bf16)
        pl.BlockSpec((1, Cp), lambda m: (0, 0)),             # b3 (f32)
    ]

    compiler_params = pltpu.CompilerParams(dimension_semantics=("parallel",))

    args = (xf, params["w1p"], params["b1p"], params["w2p"], params["b2p"],
            params["w3p"], params["b3p"])

    if return_z:
        out_p, z_p = pl.pallas_call(
            _mlp_kernel_with_z,
            out_shape=(
                jax.ShapeDtypeStruct((B, Cp), jnp.float32),
                jax.ShapeDtypeStruct((B, Hp), jnp.float32),
            ),
            grid_spec=pltpu.PrefetchScalarGridSpec(
                num_scalar_prefetch=0,
                grid=grid,
                in_specs=[x_spec] + w_specs,
                out_specs=[
                    pl.BlockSpec((tm, Cp), lambda m: (m, 0)),   # logits
                    pl.BlockSpec((tm, Hp), lambda m: (m, 0)),   # z
                ],
            ),
            compiler_params=compiler_params,
        )(*args)
        return out_p[:, :num_classes], z_p[:, :HIDDEN]

    out_p = pl.pallas_call(
        _mlp_kernel,
        out_shape=jax.ShapeDtypeStruct((B, Cp), jnp.float32),
        grid_spec=pltpu.PrefetchScalarGridSpec(
            num_scalar_prefetch=0,
            grid=grid,
            in_specs=[x_spec] + w_specs,
            out_specs=pl.BlockSpec((tm, Cp), lambda m: (m, 0)),
        ),
        compiler_params=compiler_params,
    )(*args)
    return out_p[:, :num_classes]


# --------------------------- parameters & references -------------------------

def init_params(key, num_classes):
    ks = jax.random.split(key, 6)

    def u(k, shape, fan_in):
        bound = 1.0 / math.sqrt(fan_in)
        return jax.random.uniform(k, shape, jnp.float32, -bound, bound)

    # PyTorch nn.Linear layouts: weight (out, in), bias (out,)
    w1 = u(ks[0], (HIDDEN, IN_FEATURES), IN_FEATURES)
    b1 = u(ks[1], (HIDDEN,), IN_FEATURES)
    w2 = u(ks[2], (HIDDEN, HIDDEN), HIDDEN)
    b2 = u(ks[3], (HIDDEN,), HIDDEN)
    w3 = u(ks[4], (num_classes, HIDDEN), HIDDEN)
    b3 = u(ks[5], (num_classes,), HIDDEN)

    Hp = _round_up(HIDDEN, 128)                     # 256
    Cp = _round_up(max(num_classes, 128), 128)      # 128

    def pad2(a, r, c, dtype):
        o = jnp.zeros((r, c), dtype)
        return o.at[:a.shape[0], :a.shape[1]].set(a.astype(dtype))

    def pad_row(a, c):
        o = jnp.zeros((1, c), jnp.float32)
        return o.at[0, :a.shape[0]].set(a)

    return {
        "num_classes": num_classes,
        # unpadded PyTorch-layout f32 copies (for the pure-JAX reference)
        "w1": w1, "b1": b1, "w2": w2, "b2": b2, "w3": w3, "b3": b3,
        # padded (in, out)-layout bf16 weights (MXU operands); f32 biases
        "w1p": pad2(w1.T, IN_FEATURES, Hp, jnp.bfloat16),
        "b1p": pad_row(b1, Hp),
        "w2p": pad2(w2.T, Hp, Hp, jnp.bfloat16),
        "b2p": pad_row(b2, Hp),
        "w3p": pad2(w3.T, Hp, Cp, jnp.bfloat16),
        "b3p": pad_row(b3, Cp),
    }


def reference_forward(x, params, return_z=False):
    """Pure-JAX f32 reference with PyTorch MnistMLP semantics."""
    B = x.shape[0]
    xf = x.reshape(B, -1)
    h = jax.nn.relu(xf @ params["w1"].T + params["b1"])
    z = jax.nn.relu(h @ params["w2"].T + params["b2"])
    y = z @ params["w3"].T + params["b3"]
    return (y, z) if return_z else y


def reference_forward_bf16(x, params, return_z=False):
    """Mixed-precision reference matching the kernel's bf16-operand/f32-acc path."""
    B = x.shape[0]
    xf = x.reshape(B, -1).astype(jnp.bfloat16)

    def lin(a, w, b):
        return jnp.dot(a, w.T.astype(jnp.bfloat16),
                       preferred_element_type=jnp.float32) + b

    h = jax.nn.relu(lin(xf, params["w1"], params["b1"]))
    z = jax.nn.relu(lin(h.astype(jnp.bfloat16), params["w2"], params["b2"]))
    y = lin(z.astype(jnp.bfloat16), params["w3"], params["b3"])
    return (y, z) if return_z else y


# ----------------------------------- main ------------------------------------

if __name__ == "__main__":
    num_classes = 10
    key = jax.random.PRNGKey(0)
    pkey, xkey = jax.random.split(key)
    params = init_params(pkey, num_classes)

    # MNIST-shaped input: batch=2, (B, 1, 28, 28) -> flattens to 784 features.
    x = jax.random.normal(xkey, (2, 1, 28, 28), dtype=jnp.float32)

    out, z = mnist_mlp_forward(x, params, return_z=True)
    out_only = mnist_mlp_forward(x, params, return_z=False)
    out = jax.block_until_ready(out)
    z = jax.block_until_ready(z)
    out_only = jax.block_until_ready(out_only)

    assert out.shape == (2, num_classes) and out.dtype == jnp.float32
    assert z.shape == (2, HIDDEN) and z.dtype == jnp.float32
    assert out_only.shape == (2, num_classes)

    # Both call variants must agree on the logits.
    if not jnp.allclose(out, out_only, atol=1e-6, rtol=1e-6):
        raise AssertionError("return_z=True/False logits mismatch")

    # Tight check against a numerics-matched mixed-precision reference.
    ref_out_mp, ref_z_mp = reference_forward_bf16(x, params, return_z=True)
    if not jnp.allclose(out, ref_out_mp, atol=2e-3, rtol=2e-3):
        raise AssertionError(
            f"logits mismatch vs bf16 ref, max abs err "
            f"{jnp.max(jnp.abs(out - ref_out_mp))}")
    if not jnp.allclose(z, ref_z_mp, atol=2e-3, rtol=2e-3):
        raise AssertionError(
            f"z mismatch vs bf16 ref, max abs err "
            f"{jnp.max(jnp.abs(z - ref_z_mp))}")

    # Looser check against the full-f32 PyTorch-semantics reference
    # (bf16 MXU operands => ~1e-2-level agreement is expected).
    ref_out, ref_z = reference_forward(x, params, return_z=True)
    if not jnp.allclose(out, ref_out, atol=5e-2, rtol=5e-2):
        raise AssertionError(
            f"logits mismatch vs f32 ref, max abs err "
            f"{jnp.max(jnp.abs(out - ref_out))}")
    if not jnp.allclose(z, ref_z, atol=5e-2, rtol=5e-2):
        raise AssertionError(
            f"z mismatch vs f32 ref, max abs err "
            f"{jnp.max(jnp.abs(z - ref_z))}")

    print("KERNEL_OK")
</pallas_src>

<mosaic_0001>
module attributes {stable_mosaic.version = 11 : i64} {
  func.func @_mlp_kernel_with_z(%arg0: i32, %arg1: memref<16x784xbf16, #tpu.memory_space<vmem>>, %arg2: memref<784x256xbf16, #tpu.memory_space<vmem>>, %arg3: memref<1x256xf32, #tpu.memory_space<vmem>>, %arg4: memref<256x256xbf16, #tpu.memory_space<vmem>>, %arg5: memref<1x256xf32, #tpu.memory_space<vmem>>, %arg6: memref<256x128xbf16, #tpu.memory_space<vmem>>, %arg7: memref<1x128xf32, #tpu.memory_space<vmem>>, %arg8: memref<16x128xf32, #tpu.memory_space<vmem>>, %arg9: memref<16x256xf32, #tpu.memory_space<vmem>>) attributes {dimension_semantics = [#tpu.dimension_semantics<parallel>], iteration_bounds = array<i64: 1>, scalar_prefetch = 0 : i64, scratch_operands = 0 : i64, tpu.core_type = #tpu.core_type<tc>, window_params = [{transform_indices = @transform_0, window_bounds = array<i64: 16, 784>}, {pipeline_mode = #tpu.pipeline_mode<synchronous>, transform_indices = @transform_1, window_bounds = array<i64: 784, 256>}, {pipeline_mode = #tpu.pipeline_mode<synchronous>, transform_indices = @transform_2, window_bounds = array<i64: 1, 256>}, {pipeline_mode = #tpu.pipeline_mode<synchronous>, transform_indices = @transform_3, window_bounds = array<i64: 256, 256>}, {pipeline_mode = #tpu.pipeline_mode<synchronous>, transform_indices = @transform_4, window_bounds = array<i64: 1, 256>}, {pipeline_mode = #tpu.pipeline_mode<synchronous>, transform_indices = @transform_5, window_bounds = array<i64: 256, 128>}, {pipeline_mode = #tpu.pipeline_mode<synchronous>, transform_indices = @transform_6, window_bounds = array<i64: 1, 128>}, {transform_indices = @transform_7, window_bounds = array<i64: 16, 128>}, {transform_indices = @transform_8, window_bounds = array<i64: 16, 256>}]} {
    %c0 = arith.constant 0 : index
    %c0_0 = arith.constant 0 : index
    %0 = vector.load %arg1[%c0, %c0_0] : memref<16x784xbf16, #tpu.memory_space<vmem>>, vector<16x784xbf16>
    %c0_1 = arith.constant 0 : index
    %c0_2 = arith.constant 0 : index
    %1 = vector.load %arg2[%c0_1, %c0_2] : memref<784x256xbf16, #tpu.memory_space<vmem>>, vector<784x256xbf16>
    %cst = arith.constant dense<0.000000e+00> : vector<16x256xf32>
    %2 = tpu.matmul %0, %1, %cst {dimension_numbers = #tpu.dot_dimension_numbers<[1], [0], [0], [1], [0, 0, 1, 1], [], []>} : vector<16x784xbf16>, vector<784x256xbf16>, vector<16x256xf32> -> vector<16x256xf32>
    %c0_3 = arith.constant 0 : index
    %c0_4 = arith.constant 0 : index
    %3 = vector.load %arg3[%c0_3, %c0_4] : memref<1x256xf32, #tpu.memory_space<vmem>>, vector<1x256xf32>
    %4 = vector.broadcast %3 : vector<1x256xf32> to vector<16x256xf32>
    %5 = arith.addf %2, %4 : vector<16x256xf32>
    %cst_5 = arith.constant 0.000000e+00 : f32
    %6 = vector.broadcast %cst_5 : f32 to vector<16x256xf32>
    %7 = arith.maximumf %5, %6 : vector<16x256xf32>
    %8 = arith.truncf %7 : vector<16x256xf32> to vector<16x256xbf16>
    %c0_6 = arith.constant 0 : index
    %c0_7 = arith.constant 0 : index
    %9 = vector.load %arg4[%c0_6, %c0_7] : memref<256x256xbf16, #tpu.memory_space<vmem>>, vector<256x256xbf16>
    %cst_8 = arith.constant dense<0.000000e+00> : vector<16x256xf32>
    %10 = tpu.matmul %8, %9, %cst_8 {dimension_numbers = #tpu.dot_dimension_numbers<[1], [0], [0], [1], [0, 0, 1, 1], [], []>} : vector<16x256xbf16>, vector<256x256xbf16>, vector<16x256xf32> -> vector<16x256xf32>
    %c0_9 = arith.constant 0 : index
    %c0_10 = arith.constant 0 : index
    %11 = vector.load %arg5[%c0_9, %c0_10] : memref<1x256xf32, #tpu.memory_space<vmem>>, vector<1x256xf32>
    %12 = vector.broadcast %11 : vector<1x256xf32> to vector<16x256xf32>
    %13 = arith.addf %10, %12 : vector<16x256xf32>
    %cst_11 = arith.constant 0.000000e+00 : f32
    %14 = vector.broadcast %cst_11 : f32 to vector<16x256xf32>
    %15 = arith.maximumf %13, %14 : vector<16x256xf32>
    %16 = arith.truncf %15 : vector<16x256xf32> to vector<16x256xbf16>
    %c0_12 = arith.constant 0 : index
    %c0_13 = arith.constant 0 : index
    %17 = vector.load %arg6[%c0_12, %c0_13] : memref<256x128xbf16, #tpu.memory_space<vmem>>, vector<256x128xbf16>
    %cst_14 = arith.constant dense<0.000000e+00> : vector<16x128xf32>
    %18 = tpu.matmul %16, %17, %cst_14 {dimension_numbers = #tpu.dot_dimension_numbers<[1], [0], [0], [1], [0, 0, 1, 1], [], []>} : vector<16x256xbf16>, vector<256x128xbf16>, vector<16x128xf32> -> vector<16x128xf32>
    %c0_15 = arith.constant 0 : index
    %c0_16 = arith.constant 0 : index
    %19 = vector.load %arg7[%c0_15, %c0_16] : memref<1x128xf32, #tpu.memory_space<vmem>>, vector<1x128xf32>
    %20 = vector.broadcast %19 : vector<1x128xf32> to vector<16x128xf32>
    %21 = arith.addf %18, %20 : vector<16x128xf32>
    %c0_17 = arith.constant 0 : index
    %c0_18 = arith.constant 0 : index
    %22 = vector.load %arg8[%c0_17, %c0_18] : memref<16x128xf32, #tpu.memory_space<vmem>>, vector<16x128xf32>
    tpu.vector_store %arg8[%c0_17, %c0_18], %21 {strides = array<i32>} : memref<16x128xf32, #tpu.memory_space<vmem>>, vector<16x128xf32>,
    %c0_19 = arith.constant 0 : index
    %c0_20 = arith.constant 0 : index
    %23 = vector.load %arg9[%c0_19, %c0_20] : memref<16x256xf32, #tpu.memory_space<vmem>>, vector<16x256xf32>
    tpu.vector_store %arg9[%c0_19, %c0_20], %15 {strides = array<i32>} : memref<16x256xf32, #tpu.memory_space<vmem>>, vector<16x256xf32>,
    return
  }
  func.func @transform_0(%arg0: i32) -> (i32, i32) {
    %c0_i32 = arith.constant 0 : i32
    %c0_i32_0 = arith.constant 0 : i32
    return %arg0, %c0_i32 : i32, i32
  }
  func.func @transform_1(%arg0: i32) -> (i32, i32) {
    %c0_i32 = arith.constant 0 : i32
    %c0_i32_0 = arith.constant 0 : i32
    %c0_i32_1 = arith.constant 0 : i32
    return %c0_i32, %c0_i32_0 : i32, i32
  }
  func.func @transform_2(%arg0: i32) -> (i32, i32) {
    %c0_i32 = arith.constant 0 : i32
    %c0_i32_0 = arith.constant 0 : i32
    %c0_i32_1 = arith.constant 0 : i32
    return %c0_i32, %c0_i32_0 : i32, i32
  }
  func.func @transform_3(%arg0: i32) -> (i32, i32) {
    %c0_i32 = arith.constant 0 : i32
    %c0_i32_0 = arith.constant 0 : i32
    %c0_i32_1 = arith.constant 0 : i32
    return %c0_i32, %c0_i32_0 : i32, i32
  }
  func.func @transform_4(%arg0: i32) -> (i32, i32) {
    %c0_i32 = arith.constant 0 : i32
    %c0_i32_0 = arith.constant 0 : i32
    %c0_i32_1 = arith.constant 0 : i32
    return %c0_i32, %c0_i32_0 : i32, i32
  }
  func.func @transform_5(%arg0: i32) -> (i32, i32) {
    %c0_i32 = arith.constant 0 : i32
    %c0_i32_0 = arith.constant 0 : i32
    %c0_i32_1 = arith.constant 0 : i32
    return %c0_i32, %c0_i32_0 : i32, i32
  }
  func.func @transform_6(%arg0: i32) -> (i32, i32) {
    %c0_i32 = arith.constant 0 : i32
    %c0_i32_0 = arith.constant 0 : i32
    %c0_i32_1 = arith.constant 0 : i32
    return %c0_i32, %c0_i32_0 : i32, i32
  }
  func.func @transform_7(%arg0: i32) -> (i32, i32) {
    %c0_i32 = arith.constant 0 : i32
    %c0_i32_0 = arith.constant 0 : i32
    return %arg0, %c0_i32 : i32, i32
  }
  func.func @transform_8(%arg0: i32) -> (i32, i32) {
    %c0_i32 = arith.constant 0 : i32
    %c0_i32_0 = arith.constant 0 : i32
    return %arg0, %c0_i32 : i32, i32
  }
}

</mosaic_0001>

<llo_original>
// kernel: tpu_custom_call.1
$region0: #{tpu_custom_call.1}
  #allocation0 [shape = 'u32[]', space=smem, size = 0x4, offset = 0x4, fixed_abs, tag = 'smem constant byte address 0x4 - core index']
  #allocation1 [shape = 'u32[144,128]{1,0:T(1,128)}', space=vmem, size = 0x12000, scoped, tag = 'internal scratch']
  %s0 = inlined_call_operand.hbm [shape: bf16[2,784], index: 0, kind: input, shape index: {}]
  %s1 = inlined_call_operand.hbm [shape: bf16[784,256], index: 1, kind: input, shape index: {}]
  %s2 = inlined_call_operand.vmem [shape: f32[1,256], index: 2, kind: input, shape index: {}]
  %s3 = inlined_call_operand.hbm [shape: bf16[256,256], index: 3, kind: input, shape index: {}]
  %s4 = inlined_call_operand.vmem [shape: f32[1,256], index: 4, kind: input, shape index: {}]
  %s5 = inlined_call_operand.hbm [shape: bf16[256,128], index: 5, kind: input, shape index: {}]
  %s6 = inlined_call_operand.vmem [shape: f32[1,128], index: 6, kind: input, shape index: {}]
  %s7 = inlined_call_operand.hbm [shape: f32[2,128], index: 7, kind: output, shape index: {0}]
  %s8 = inlined_call_operand.hbm [shape: f32[2,256], index: 8, kind: output, shape index: {1}]
  %9 = xla_tuple %s7, %s8
  %s10 = sld [smem:[#allocation0]]
  $region62: #{tpu_custom_call.1} parent=0
    _
  %s12 = ssub.s32 1, %s10
  %s13 = scalar_select 0, %s12, %s10
  $region1: #{tpu_custom_call.1} parent=0
    #allocation2 [shape = 'u8[28672]{0}', space=vmem, size = 0x7000, scoped, tag = 'input window, operand 0, single buffered']
    #allocation3 [shape = 's32[1]{0}', space=sflag, size = 0x4, scoped, tag = 'scoped memory for tpu_custom_call.1']
    #allocation4 [shape = 's32[1]{0}', space=sflag, size = 0x4, scoped, tag = 'scoped memory for tpu_custom_call.1']
    #allocation5 [shape = 'u8[401408]{0}', space=vmem, size = 0x62000, scoped, tag = 'input window, operand 1, single buffered']
    #allocation6 [shape = 's32[1]{0}', space=sflag, size = 0x4, scoped, tag = 'scoped memory for tpu_custom_call.1']
    #allocation7 [shape = 'u8[131072]{0}', space=vmem, size = 0x20000, scoped, tag = 'input window, operand 3, single buffered']
    #allocation8 [shape = 'u8[65536]{0}', space=vmem, size = 0x10000, scoped, tag = 'input window, operand 5, single buffered']
    #allocation9 [shape = 's32[1]{0}', space=sflag, size = 0x4, scoped, tag = 'scoped memory for tpu_custom_call.1']
    #allocation10 [shape = 'u8[8192]{0}', space=vmem, size = 0x2000, scoped, tag = 'output window, operand 0, single buffered']
    #allocation11 [shape = 'u8[16384]{0}', space=vmem, size = 0x4000, scoped, tag = 'output window, operand 1, single buffered']
    #allocation12 [shape = 's32[1]{0}', space=sflag, size = 0x4, scoped, tag = 'scoped memory for tpu_custom_call.1']
    %14 = vsyncpa [#allocation3], 0
    %15 = vsyncpa [#allocation6], 0
    %16 = vsyncpa [#allocation9], 0
    %17 = vsyncpa [#allocation4], 0
    %18 = vsyncpa [#allocation12], 0
    // Predicated region
    $region2: #{tpu_custom_call.1} parent=1 // pred_check
      _
    $region3: #{tpu_custom_call.1} parent=1 // pred_check_branch
      %20 = sbr.rel (0) target = $region5
    $region4: #{tpu_custom_call.1} parent=1 // pred_region
      %s22 = ssub.s32 896, 112
      %23 = vsyncadd [#allocation3], %s22
      %s24 = sshll.u32 [#allocation2], 4
      %s25 = int_to_ptr.vmem [resolvable:$true] %s24
      %30 = dma.hbm_to_vmem [thread:$0]  %s0, 112, %s25, [#allocation3], 112, 112, 7
    $region5: #{tpu_custom_call.1} parent=1 // pred_fallthru
      _
    // Predicated region
    $region6: #{tpu_custom_call.1} parent=1 // pred_check
      _
    $region7: #{tpu_custom_call.1} parent=1 // pred_check_branch
      %32 = sbr.rel (0) target = $region9
    $region8: #{tpu_custom_call.1} parent=1 // pred_region
      %s34 = ssub.s32 12544, 12544
      %35 = vsyncadd [#allocation6], %s34
      %s36 = sshll.u32 [#allocation5], 4
      %s37 = int_to_ptr.vmem [resolvable:$true] %s36
      %42 = dma.hbm_to_vmem [thread:$0]  %s1, 12544, %s37, [#allocation6], 128, 128, 8
    $region9: #{tpu_custom_call.1} parent=1 // pred_fallthru
      _
    // Predicated region
    $region10: #{tpu_custom_call.1} parent=1 // pred_check
      _
    $region11: #{tpu_custom_call.1} parent=1 // pred_check_branch
      %44 = sbr.rel (0) target = $region13
    $region12: #{tpu_custom_call.1} parent=1 // pred_region
      _
    $region13: #{tpu_custom_call.1} parent=1 // pred_fallthru
      _
    // Predicated region
    $region14: #{tpu_custom_call.1} parent=1 // pred_check
      _
    $region15: #{tpu_custom_call.1} parent=1 // pred_check_branch
      %46 = sbr.rel (0) target = $region17
    $region16: #{tpu_custom_call.1} parent=1 // pred_region
      %s48 = ssub.s32 4096, 4096
      %49 = vsyncadd [#allocation6], %s48
      %s50 = sshll.u32 [#allocation7], 4
      %s51 = int_to_ptr.vmem [resolvable:$true] %s50
      %56 = dma.hbm_to_vmem [thread:$0]  %s3, 4096, %s51, [#allocation6], 128, 128, 8
    $region17: #{tpu_custom_call.1} parent=1 // pred_fallthru
      _
    // Predicated region
    $region18: #{tpu_custom_call.1} parent=1 // pred_check
      _
    $region19: #{tpu_custom_call.1} parent=1 // pred_check_branch
      %58 = sbr.rel (0) target = $region21
    $region20: #{tpu_custom_call.1} parent=1 // pred_region
      _
    $region21: #{tpu_custom_call.1} parent=1 // pred_fallthru
      _
    // Predicated region
    $region22: #{tpu_custom_call.1} parent=1 // pred_check
      _
    $region23: #{tpu_custom_call.1} parent=1 // pred_check_branch
      %60 = sbr.rel (0) target = $region25
    $region24: #{tpu_custom_call.1} parent=1 // pred_region
      %s62 = ssub.s32 2048, 2048
      %63 = vsyncadd [#allocation9], %s62
      %s64 = sshll.u32 [#allocation8], 4
      %s65 = int_to_ptr.vmem [resolvable:$true] %s64
      %70 = dma.hbm_to_vmem [thread:$0]  %s5, 2048, %s65, [#allocation9], 64, 64, 4
    $region25: #{tpu_custom_call.1} parent=1 // pred_fallthru
      _
    // Predicated region
    $region26: #{tpu_custom_call.1} parent=1 // pred_check
      _
    $region27: #{tpu_custom_call.1} parent=1 // pred_check_branch
      %72 = sbr.rel (0) target = $region29
    $region28: #{tpu_custom_call.1} parent=1 // pred_region
      _
    $region29: #{tpu_custom_call.1} parent=1 // pred_fallthru
      _
    // Predicated region
    $region30: #{tpu_custom_call.1} parent=1 // pred_check
      _
    $region31: #{tpu_custom_call.1} parent=1 // pred_check_branch
      %74 = sbr.rel (0) target = $region33
    $region32: #{tpu_custom_call.1} parent=1 // pred_region
      %75 = dma.done [#allocation3], 896
    $region33: #{tpu_custom_call.1} parent=1 // pred_fallthru
      _
    // Predicated region
    $region34: #{tpu_custom_call.1} parent=1 // pred_check
      _
    $region35: #{tpu_custom_call.1} parent=1 // pred_check_branch
      %77 = sbr.rel (0) target = $region37
    $region36: #{tpu_custom_call.1} parent=1 // pred_region
      %78 = dma.done [#allocation6], 12544
    $region37: #{tpu_custom_call.1} parent=1 // pred_fallthru
      _
    // Predicated region
    $region38: #{tpu_custom_call.1} parent=1 // pred_check
      _
    $region39: #{tpu_custom_call.1} parent=1 // pred_check_branch
      %80 = sbr.rel (0) target = $region41
    $region40: #{tpu_custom_call.1} parent=1 // pred_region
      %81 = dma.done [#allocation6], 4096
    $region41: #{tpu_custom_call.1} parent=1 // pred_fallthru
      _
    // Predicated region
    $region42: #{tpu_custom_call.1} parent=1 // pred_check
      _
    $region43: #{tpu_custom_call.1} parent=1 // pred_check_branch
      %83 = sbr.rel (0) target = $region45
    $region44: #{tpu_custom_call.1} parent=1 // pred_region
      %84 = dma.done [#allocation9], 2048
    $region45: #{tpu_custom_call.1} parent=1 // pred_fallthru
      _
    %v86 = vld [vmem:[#allocation2] sm:$0x7f]
    %v87 = vld [vmem:[#allocation2 + $0x7] sm:$0x7f]
    %v88 = vld [vmem:[#allocation2 + $0xe] sm:$0x7f]
    %v89 = vld [vmem:[#allocation2 + $0x15] sm:$0x7f]
    %v90 = vld [vmem:[#allocation2 + $0x1c] sm:$0x7f]
    %v91 = vld [vmem:[#allocation2 + $0x23] sm:$0x7f]
    %v92 = vld [vmem:[#allocation2 + $0x2a] sm:$0x7f]
    %v93 = vld [vmem:[#allocation2 + $0x31] sm:$0x7f]
    %v94 = vld [vmem:[#allocation5] sm:$0xff]
    %v95 = vld [vmem:[#allocation5 + $0x8] sm:$0xff]
    %v96 = vld [vmem:[#allocation5 + $0x10] sm:$0xff]
    %v97 = vld [vmem:[#allocation5 + $0x18] sm:$0xff]
    %v98 = vld [vmem:[#allocation5 + $0x20] sm:$0xff]
    %v99 = vld [vmem:[#allocation5 + $0x28] sm:$0xff]
    %v100 = vld [vmem:[#allocation5 + $0x30] sm:$0xff]
    %v101 = vld [vmem:[#allocation5 + $0x38] sm:$0xff]
    %v102 = vld [vmem:[#allocation5 + $0x40] sm:$0xff]
    %v103 = vld [vmem:[#allocation5 + $0x48] sm:$0xff]
    %v104 = vld [vmem:[#allocation5 + $0x50] sm:$0xff]
    %v105 = vld [vmem:[#allocation5 + $0x58] sm:$0xff]
    %v106 = vld [vmem:[#allocation5 + $0x60] sm:$0xff]
    %v107 = vld [vmem:[#allocation5 + $0x68] sm:$0xff]
    %v108 = vld [vmem:[#allocation5 + $0x70] sm:$0xff]
    %v109 = vld [vmem:[#allocation5 + $0x78] sm:$0xff]
    %v110 = vld [vmem:[#allocation5 + $0x80] sm:$0xff]
    %v111 = vld [vmem:[#allocation5 + $0x88] sm:$0xff]
    %v112 = vld [vmem:[#allocation5 + $0x90] sm:$0xff]
    %v113 = vld [vmem:[#allocation5 + $0x98] sm:$0xff]
    %v114 = vld [vmem:[#allocation5 + $0xa0] sm:$0xff]
    %v115 = vld [vmem:[#allocation5 + $0xa8] sm:$0xff]
    %v116 = vld [vmem:[#allocation5 + $0xb0] sm:$0xff]
    %v117 = vld [vmem:[#allocation5 + $0xb8] sm:$0xff]
    %v118 = vld [vmem:[#allocation5 + $0xc0] sm:$0xff]
    %v119 = vld [vmem:[#allocation5 + $0xc8] sm:$0xff]
    %v120 = vld [vmem:[#allocation5 + $0xd0] sm:$0xff]
    %v121 = vld [vmem:[#allocation5 + $0xd8] sm:$0xff]
    %v122 = vld [vmem:[#allocation5 + $0xe0] sm:$0xff]
    %v123 = vld [vmem:[#allocation5 + $0xe8] sm:$0xff]
    %v124 = vld [vmem:[#allocation5 + $0xf0] sm:$0xff]
    %v125 = vld [vmem:[#allocation5 + $0xf8] sm:$0xff]
    %v126 = vld [vmem:[#allocation5 + $0x100] sm:$0xff]
    %v127 = vld [vmem:[#allocation5 + $0x108] sm:$0xff]
    %v128 = vld [vmem:[#allocation5 + $0x110] sm:$0xff]
    %v129 = vld [vmem:[#allocation5 + $0x118] sm:$0xff]
    %v130 = vld [vmem:[#allocation5 + $0x120] sm:$0xff]
    %v131 = vld [vmem:[#allocation5 + $0x128] sm:$0xff]
    %v132 = vld [vmem:[#allocation5 + $0x130] sm:$0xff]
    %v133 = vld [vmem:[#allocation5 + $0x138] sm:$0xff]
    %v134 = vld [vmem:[#allocation5 + $0x140] sm:$0xff]
    %v135 = vld [vmem:[#allocation5 + $0x148] sm:$0xff]
    %v136 = vld [vmem:[#allocation5 + $0x150] sm:$0xff]
    %v137 = vld [vmem:[#allocation5 + $0x158] sm:$0xff]
    %v138 = vld [vmem:[#allocation5 + $0x160] sm:$0xff]
    %v139 = vld [vmem:[#allocation5 + $0x168] sm:$0xff]
    %v140 = vld [vmem:[#allocation5 + $0x170] sm:$0xff]
    %v141 = vld [vmem:[#allocation5 + $0x178] sm:$0xff]
    %v142 = vld [vmem:[#allocation5 + $0x180] sm:$0xff]
    %v143 = vld [vmem:[#allocation5 + $0x188] sm:$0xff]
    %v144 = vld [vmem:[#allocation5 + $0x190] sm:$0xff]
    %v145 = vld [vmem:[#allocation5 + $0x198] sm:$0xff]
    %v146 = vld [vmem:[#allocation5 + $0x1a0] sm:$0xff]
    %v147 = vld [vmem:[#allocation5 + $0x1a8] sm:$0xff]
    %v148 = vld [vmem:[#allocation5 + $0x1b0] sm:$0xff]
    %v149 = vld [vmem:[#allocation5 + $0x1b8] sm:$0xff]
    %v150 = vld [vmem:[#allocation5 + $0x1c0] sm:$0xff]
    %v151 = vld [vmem:[#allocation5 + $0x1c8] sm:$0xff]
    %v152 = vld [vmem:[#allocation5 + $0x1d0] sm:$0xff]
    %v153 = vld [vmem:[#allocation5 + $0x1d8] sm:$0xff]
    %v154 = vld [vmem:[#allocation5 + $0x1e0] sm:$0xff]
    %v155 = vld [vmem:[#allocation5 + $0x1e8] sm:$0xff]
    %v156 = vld [vmem:[#allocation5 + $0x1f0] sm:$0xff]
    %v157 = vld [vmem:[#allocation5 + $0x1f8] sm:$0xff]
    %v158 = vld [vmem:[#allocation5 + $0x200] sm:$0xff]
    %v159 = vld [vmem:[#allocation5 + $0x208] sm:$0xff]
    %v160 = vld [vmem:[#allocation5 + $0x210] sm:$0xff]
    %v161 = vld [vmem:[#allocation5 + $0x218] sm:$0xff]
    %v162 = vld [vmem:[#allocation5 + $0x220] sm:$0xff]
    %v163 = vld [vmem:[#allocation5 + $0x228] sm:$0xff]
    %v164 = vld [vmem:[#allocation5 + $0x230] sm:$0xff]
    %v165 = vld [vmem:[#allocation5 + $0x238] sm:$0xff]
    %v166 = vld [vmem:[#allocation5 + $0x240] sm:$0xff]
    %v167 = vld [vmem:[#allocation5 + $0x248] sm:$0xff]
    %v168 = vld [vmem:[#allocation5 + $0x250] sm:$0xff]
    %v169 = vld [vmem:[#allocation5 + $0x258] sm:$0xff]
    %v170 = vld [vmem:[#allocation5 + $0x260] sm:$0xff]
    %v171 = vld [vmem:[#allocation5 + $0x268] sm:$0xff]
    %v172 = vld [vmem:[#allocation5 + $0x270] sm:$0xff]
    %v173 = vld [vmem:[#allocation5 + $0x278] sm:$0xff]
    %v174 = vld [vmem:[#allocation5 + $0x280] sm:$0xff]
    %v175 = vld [vmem:[#allocation5 + $0x288] sm:$0xff]
    %v176 = vld [vmem:[#allocation5 + $0x290] sm:$0xff]
    %v177 = vld [vmem:[#allocation5 + $0x298] sm:$0xff]
    %v178 = vld [vmem:[#allocation5 + $0x2a0] sm:$0xff]
    %v179 = vld [vmem:[#allocation5 + $0x2a8] sm:$0xff]
    %v180 = vld [vmem:[#allocation5 + $0x2b0] sm:$0xff]
    %v181 = vld [vmem:[#allocation5 + $0x2b8] sm:$0xff]
    %v182 = vld [vmem:[#allocation5 + $0x2c0] sm:$0xff]
    %v183 = vld [vmem:[#allocation5 + $0x2c8] sm:$0xff]
    %v184 = vld [vmem:[#allocation5 + $0x2d0] sm:$0xff]
    %v185 = vld [vmem:[#allocation5 + $0x2d8] sm:$0xff]
    %v186 = vld [vmem:[#allocation5 + $0x2e0] sm:$0xff]
    %v187 = vld [vmem:[#allocation5 + $0x2e8] sm:$0xff]
    %v188 = vld [vmem:[#allocation5 + $0x2f0] sm:$0xff]
    %v189 = vld [vmem:[#allocation5 + $0x2f8] sm:$0xff]
    %v190 = vld [vmem:[#allocation5 + $0x300] sm:$0xff]
    %v191 = vld [vmem:[#allocation5 + $0x308] sm:$0xff]
    %v192 = vld [vmem:[%s2] sm:$0x3]
    %v194 = vlaneseq
    %v195 = vshrl.u32 %v194, 7
    %v196 = vsub.s32 0, %v195
    %v197 = vrot.slane %v192, %v196
    %v198 = vlaneseq
    %v199 = vshrl.u32 %v198, 7
    %v200 = vsub.s32 1, %v199
    %v201 = vrot.slane %v192, %v200
    %v212 = vcombine.low %v86, %v87
    %v213 = vcombine.high %v86, %v87
    %v214 = vcombine.low %v88, %v89
    %v215 = vcombine.high %v88, %v89
    %v216 = vcombine.low %v90, %v91
    %v217 = vcombine.high %v90, %v91
    %v218 = vcombine.low %v92, %v93
    %v219 = vcombine.high %v92, %v93
    %v221 = vunpack.c.l.s4 1966171168
    %v222 = vunpack.c.0.s8 %v221
    %v223 = vlaneseq
    %v224 = vshrl.u32 %v223, 7
    %v225 = vsub.s32 %v222, %v224
    %v226 = vrot.slane %v212, %v225
    %v228 = vunpack.c.l.s4 1966171168
    %v229 = vunpack.c.0.s8 %v228
    %v230 = vlaneseq
    %v231 = vshrl.u32 %v230, 7
    %v232 = vsub.s32 %v229, %v231
    %v233 = vrot.slane %v213, %v232
    %v235 = vunpack.c.l.s4 1966171168
    %v236 = vunpack.c.0.s8 %v235
    %v237 = vlaneseq
    %v238 = vshrl.u32 %v237, 7
    %v239 = vsub.s32 %v236, %v238
    %v240 = vrot.slane %v214, %v239
    %v242 = vunpack.c.l.s4 1966171168
    %v243 = vunpack.c.0.s8 %v242
    %v244 = vlaneseq
    %v245 = vshrl.u32 %v244, 7
    %v246 = vsub.s32 %v243, %v245
    %v247 = vrot.slane %v215, %v246
    %v249 = vunpack.c.l.s4 1966171168
    %v250 = vunpack.c.0.s8 %v249
    %v251 = vlaneseq
    %v252 = vshrl.u32 %v251, 7
    %v253 = vsub.s32 %v250, %v252
    %v254 = vrot.slane %v216, %v253
    %v256 = vunpack.c.l.s4 1966171168
    %v257 = vunpack.c.0.s8 %v256
    %v258 = vlaneseq
    %v259 = vshrl.u32 %v258, 7
    %v260 = vsub.s32 %v257, %v259
    %v261 = vrot.slane %v217, %v260
    %v263 = vunpack.c.l.s4 1966171168
    %v264 = vunpack.c.0.s8 %v263
    %v265 = vlaneseq
    %v266 = vshrl.u32 %v265, 7
    %v267 = vsub.s32 %v264, %v266
    %v268 = vrot.slane %v218, %v267
    %v270 = vunpack.c.l.s4 1966171168
    %v271 = vunpack.c.0.s8 %v270
    %v272 = vlaneseq
    %v273 = vshrl.u32 %v272, 7
    %v274 = vsub.s32 %v271, %v273
    %v275 = vrot.slane %v219, %v274
    %v276 = vcombine.low %v226, %v240
    %v277 = vcombine.high %v226, %v240
    %v278 = vcombine.low %v233, %v247
    %v279 = vcombine.high %v233, %v247
    %v280 = vcombine.low %v254, %v268
    %v281 = vcombine.high %v254, %v268
    %v282 = vcombine.low %v261, %v275
    %v283 = vcombine.high %v261, %v275
    %v285 = vunpack.c.l.s4 1966171168
    %v286 = vunpack.c.0.s8 %v285
    %v287 = vlaneseq
    %v288 = vshrl.u32 %v287, 7
    %v289 = vsub.s32 %v286, %v288
    %v290 = vrot.slane %v276, %v289
    %v292 = vunpack.c.l.s4 1966171168
    %v293 = vunpack.c.0.s8 %v292
    %v294 = vlaneseq
    %v295 = vshrl.u32 %v294, 7
    %v296 = vsub.s32 %v293, %v295
    %v297 = vrot.slane %v278, %v296
    %v299 = vunpack.c.l.s4 1966171168
    %v300 = vunpack.c.0.s8 %v299
    %v301 = vlaneseq
    %v302 = vshrl.u32 %v301, 7
    %v303 = vsub.s32 %v300, %v302
    %v304 = vrot.slane %v277, %v303
    %v306 = vunpack.c.l.s4 1966171168
    %v307 = vunpack.c.0.s8 %v306
    %v308 = vlaneseq
    %v309 = vshrl.u32 %v308, 7
    %v310 = vsub.s32 %v307, %v309
    %v311 = vrot.slane %v279, %v310
    %v313 = vunpack.c.l.s4 1966171168
    %v314 = vunpack.c.0.s8 %v313
    %v315 = vlaneseq
    %v316 = vshrl.u32 %v315, 7
    %v317 = vsub.s32 %v314, %v316
    %v318 = vrot.slane %v280, %v317
    %v320 = vunpack.c.l.s4 1966171168
    %v321 = vunpack.c.0.s8 %v320
    %v322 = vlaneseq
    %v323 = vshrl.u32 %v322, 7
    %v324 = vsub.s32 %v321, %v323
    %v325 = vrot.slane %v282, %v324
    %v327 = vunpack.c.l.s4 1966171168
    %v328 = vunpack.c.0.s8 %v327
    %v329 = vlaneseq
    %v330 = vshrl.u32 %v329, 7
    %v331 = vsub.s32 %v328, %v330
    %v332 = vrot.slane %v281, %v331
    %v334 = vunpack.c.l.s4 1966171168
    %v335 = vunpack.c.0.s8 %v334
    %v336 = vlaneseq
    %v337 = vshrl.u32 %v336, 7
    %v338 = vsub.s32 %v335, %v337
    %v339 = vrot.slane %v283, %v338
    %v340 = vcombine.low %v290, %v318
    %v341 = vcombine.high %v290, %v318
    %v342 = vcombine.low %v297, %v325
    %v343 = vcombine.high %v297, %v325
    %v344 = vcombine.low %v304, %v332
    %v345 = vcombine.high %v304, %v332
    %v346 = vcombine.low %v311, %v339
    %v451 = vunpack.c.l.b16 %v94
    %v452 = vunpack.c.h.b16 %v94
    %v453 = vunpack.c.l.b16 %v95
    %v454 = vunpack.c.h.b16 %v95
    %v455 = vunpack.c.l.b16 %v96
    %v456 = vunpack.c.h.b16 %v96
    %v457 = vunpack.c.l.b16 %v97
    %v458 = vunpack.c.h.b16 %v97
    %v459 = vunpack.c.l.b16 %v98
    %v460 = vunpack.c.h.b16 %v98
    %v461 = vunpack.c.l.b16 %v99
    %v462 = vunpack.c.h.b16 %v99
    %v463 = vunpack.c.l.b16 %v100
    %v464 = vunpack.c.h.b16 %v100
    %v465 = vunpack.c.l.b16 %v101
    %v466 = vunpack.c.h.b16 %v101
    %v467 = vunpack.c.l.b16 %v102
    %v468 = vunpack.c.h.b16 %v102
    %v469 = vunpack.c.l.b16 %v103
    %v470 = vunpack.c.h.b16 %v103
    %v471 = vunpack.c.l.b16 %v104
    %v472 = vunpack.c.h.b16 %v104
    %v473 = vunpack.c.l.b16 %v105
    %v474 = vunpack.c.h.b16 %v105
    %v475 = vunpack.c.l.b16 %v106
    %v476 = vunpack.c.h.b16 %v106
    %v477 = vunpack.c.l.b16 %v107
    %v478 = vunpack.c.h.b16 %v107
    %v479 = vunpack.c.l.b16 %v108
    %v480 = vunpack.c.h.b16 %v108
    %v481 = vunpack.c.l.b16 %v109
    %v482 = vunpack.c.h.b16 %v109
    %v483 = vunpack.c.l.b16 %v110
    %v484 = vunpack.c.h.b16 %v110
    %v485 = vunpack.c.l.b16 %v111
    %v486 = vunpack.c.h.b16 %v111
    %v487 = vunpack.c.l.b16 %v112
    %v488 = vunpack.c.h.b16 %v112
    %v489 = vunpack.c.l.b16 %v113
    %v490 = vunpack.c.h.b16 %v113
    %v491 = vunpack.c.l.b16 %v114
    %v492 = vunpack.c.h.b16 %v114
    %v493 = vunpack.c.l.b16 %v115
    %v494 = vunpack.c.h.b16 %v115
    %v495 = vunpack.c.l.b16 %v116
    %v496 = vunpack.c.h.b16 %v116
    %v497 = vunpack.c.l.b16 %v117
    %v498 = vunpack.c.h.b16 %v117
    %v499 = vunpack.c.l.b16 %v118
    %v500 = vunpack.c.h.b16 %v118
    %v501 = vunpack.c.l.b16 %v119
    %v502 = vunpack.c.h.b16 %v119
    %v503 = vunpack.c.l.b16 %v120
    %v504 = vunpack.c.h.b16 %v120
    %v505 = vunpack.c.l.b16 %v121
    %v506 = vunpack.c.h.b16 %v121
    %v507 = vunpack.c.l.b16 %v122
    %v508 = vunpack.c.h.b16 %v122
    %v509 = vunpack.c.l.b16 %v123
    %v510 = vunpack.c.h.b16 %v123
    %v511 = vunpack.c.l.b16 %v124
    %v512 = vunpack.c.h.b16 %v124
    %v513 = vunpack.c.l.b16 %v125
    %v514 = vunpack.c.h.b16 %v125
    %v515 = vunpack.c.l.b16 %v126
    %v516 = vunpack.c.h.b16 %v126
    %v517 = vunpack.c.l.b16 %v127
    %v518 = vunpack.c.h.b16 %v127
    %v519 = vunpack.c.l.b16 %v128
    %v520 = vunpack.c.h.b16 %v128
    %v521 = vunpack.c.l.b16 %v129
    %v522 = vunpack.c.h.b16 %v129
    %v523 = vunpack.c.l.b16 %v130
    %v524 = vunpack.c.h.b16 %v130
    %v525 = vunpack.c.l.b16 %v131
    %v526 = vunpack.c.h.b16 %v131
    %v527 = vunpack.c.l.b16 %v132
    %v528 = vunpack.c.h.b16 %v132
    %v529 = vunpack.c.l.b16 %v133
    %v530 = vunpack.c.h.b16 %v133
    %v531 = vunpack.c.l.b16 %v134
    %v532 = vunpack.c.h.b16 %v134
    %v533 = vunpack.c.l.b16 %v135
    %v534 = vunpack.c.h.b16 %v135
    %v535 = vunpack.c.l.b16 %v136
    %v536 = vunpack.c.h.b16 %v136
    %v537 = vunpack.c.l.b16 %v137
    %v538 = vunpack.c.h.b16 %v137
    %v539 = vunpack.c.l.b16 %v138
    %v540 = vunpack.c.h.b16 %v138
    %v541 = vunpack.c.l.b16 %v139
    %v542 = vunpack.c.h.b16 %v139
    %v543 = vunpack.c.l.b16 %v140
    %v544 = vunpack.c.h.b16 %v140
    %v545 = vunpack.c.l.b16 %v141
    %v546 = vunpack.c.h.b16 %v141
    %v547 = vunpack.c.l.b16 %v142
    %v548 = vunpack.c.h.b16 %v142
    %v549 = vunpack.c.l.b16 %v143
    %v550 = vunpack.c.h.b16 %v143
    %v551 = vunpack.c.l.b16 %v144
    %v552 = vunpack.c.h.b16 %v144
    %v553 = vunpack.c.l.b16 %v145
    %v554 = vunpack.c.h.b16 %v145
    %v555 = vunpack.c.l.b16 %v146
    %v556 = vunpack.c.h.b16 %v146
    %v557 = vunpack.c.l.b16 %v147
    %v558 = vunpack.c.h.b16 %v147
    %v559 = vunpack.c.l.b16 %v148
    %v560 = vunpack.c.h.b16 %v148
    %v561 = vunpack.c.l.b16 %v149
    %v562 = vunpack.c.h.b16 %v149
    %v563 = vunpack.c.l.b16 %v150
    %v564 = vunpack.c.h.b16 %v150
    %v565 = vunpack.c.l.b16 %v151
    %v566 = vunpack.c.h.b16 %v151
    %v567 = vunpack.c.l.b16 %v152
    %v568 = vunpack.c.h.b16 %v152
    %v569 = vunpack.c.l.b16 %v153
    %v570 = vunpack.c.h.b16 %v153
    %v571 = vunpack.c.l.b16 %v154
    %v572 = vunpack.c.h.b16 %v154
    %v573 = vunpack.c.l.b16 %v155
    %v574 = vunpack.c.h.b16 %v155
    %v575 = vunpack.c.l.b16 %v156
    %v576 = vunpack.c.h.b16 %v156
    %v577 = vunpack.c.l.b16 %v157
    %v578 = vunpack.c.h.b16 %v157
    %v579 = vunpack.c.l.b16 %v158
    %v580 = vunpack.c.h.b16 %v158
    %v581 = vunpack.c.l.b16 %v159
    %v582 = vunpack.c.h.b16 %v159
    %v583 = vunpack.c.l.b16 %v160
    %v584 = vunpack.c.h.b16 %v160
    %v585 = vunpack.c.l.b16 %v161
    %v586 = vunpack.c.h.b16 %v161
    %v587 = vunpack.c.l.b16 %v162
    %v588 = vunpack.c.h.b16 %v162
    %v589 = vunpack.c.l.b16 %v163
    %v590 = vunpack.c.h.b16 %v163
    %v591 = vunpack.c.l.b16 %v164
    %v592 = vunpack.c.h.b16 %v164
    %v593 = vunpack.c.l.b16 %v165
    %v594 = vunpack.c.h.b16 %v165
    %v595 = vunpack.c.l.b16 %v166
    %v596 = vunpack.c.h.b16 %v166
    %v597 = vunpack.c.l.b16 %v167
    %v598 = vunpack.c.h.b16 %v167
    %v599 = vunpack.c.l.b16 %v168
    %v600 = vunpack.c.h.b16 %v168
    %v601 = vunpack.c.l.b16 %v169
    %v602 = vunpack.c.h.b16 %v169
    %v603 = vunpack.c.l.b16 %v170
    %v604 = vunpack.c.h.b16 %v170
    %v605 = vunpack.c.l.b16 %v171
    %v606 = vunpack.c.h.b16 %v171
    %v607 = vunpack.c.l.b16 %v172
    %v608 = vunpack.c.h.b16 %v172
    %v609 = vunpack.c.l.b16 %v173
    %v610 = vunpack.c.h.b16 %v173
    %v611 = vunpack.c.l.b16 %v174
    %v612 = vunpack.c.h.b16 %v174
    %v613 = vunpack.c.l.b16 %v175
    %v614 = vunpack.c.h.b16 %v175
    %v615 = vunpack.c.l.b16 %v176
    %v616 = vunpack.c.h.b16 %v176
    %v617 = vunpack.c.l.b16 %v177
    %v618 = vunpack.c.h.b16 %v177
    %v619 = vunpack.c.l.b16 %v178
    %v620 = vunpack.c.h.b16 %v178
    %v621 = vunpack.c.l.b16 %v179
    %v622 = vunpack.c.h.b16 %v179
    %v623 = vunpack.c.l.b16 %v180
    %v624 = vunpack.c.h.b16 %v180
    %v625 = vunpack.c.l.b16 %v181
    %v626 = vunpack.c.h.b16 %v181
    %v627 = vunpack.c.l.b16 %v182
    %v628 = vunpack.c.h.b16 %v182
    %v629 = vunpack.c.l.b16 %v183
    %v630 = vunpack.c.h.b16 %v183
    %v631 = vunpack.c.l.b16 %v184
    %v632 = vunpack.c.h.b16 %v184
    %v633 = vunpack.c.l.b16 %v185
    %v634 = vunpack.c.h.b16 %v185
    %v635 = vunpack.c.l.b16 %v186
    %v636 = vunpack.c.h.b16 %v186
    %v637 = vunpack.c.l.b16 %v187
    %v638 = vunpack.c.h.b16 %v187
    %v639 = vunpack.c.l.b16 %v188
    %v640 = vunpack.c.h.b16 %v188
    %v641 = vunpack.c.l.b16 %v189
    %v642 = vunpack.c.h.b16 %v189
    %v643 = vunpack.c.l.b16 %v190
    %v644 = vunpack.c.h.b16 %v190
    %v645 = vunpack.c.l.b16 %v191
    %v646 = vunpack.c.h.b16 %v191
    %v647 = vpack.c.b16 %v453, %v451
    %v648 = vpack.c.b16 %v454, %v452
    %v649 = vpack.c.b16 %v457, %v455
    %v650 = vpack.c.b16 %v458, %v456
    %v651 = vpack.c.b16 %v461, %v459
    %v652 = vpack.c.b16 %v462, %v460
    %v653 = vpack.c.b16 %v465, %v463
    %v654 = vpack.c.b16 %v466, %v464
    %v655 = vpack.c.b16 %v469, %v467
    %v656 = vpack.c.b16 %v470, %v468
    %v657 = vpack.c.b16 %v473, %v471
    %v658 = vpack.c.b16 %v474, %v472
    %v659 = vpack.c.b16 %v477, %v475
    %v660 = vpack.c.b16 %v478, %v476
    %v661 = vpack.c.b16 %v481, %v479
    %v662 = vpack.c.b16 %v482, %v480
    %v663 = vpack.c.b16 %v485, %v483
    %v664 = vpack.c.b16 %v486, %v484
    %v665 = vpack.c.b16 %v489, %v487
    %v666 = vpack.c.b16 %v490, %v488
    %v667 = vpack.c.b16 %v493, %v491
    %v668 = vpack.c.b16 %v494, %v492
    %v669 = vpack.c.b16 %v497, %v495
    %v670 = vpack.c.b16 %v498, %v496
    %v671 = vpack.c.b16 %v501, %v499
    %v672 = vpack.c.b16 %v502, %v500
    %v673 = vpack.c.b16 %v505, %v503
    %v674 = vpack.c.b16 %v506, %v504
    %v675 = vpack.c.b16 %v509, %v507
    %v676 = vpack.c.b16 %v510, %v508
    %v677 = vpack.c.b16 %v513, %v511
    %v678 = vpack.c.b16 %v514, %v512
    %v679 = vpack.c.b16 %v517, %v515
    %v680 = vpack.c.b16 %v518, %v516
    %v681 = vpack.c.b16 %v521, %v519
    %v682 = vpack.c.b16 %v522, %v520
    %v683 = vpack.c.b16 %v525, %v523
    %v684 = vpack.c.b16 %v526, %v524
    %v685 = vpack.c.b16 %v529, %v527
    %v686 = vpack.c.b16 %v530, %v528
    %v687 = vpack.c.b16 %v533, %v531
    %v688 = vpack.c.b16 %v534, %v532
    %v689 = vpack.c.b16 %v537, %v535
    %v690 = vpack.c.b16 %v538, %v536
    %v691 = vpack.c.b16 %v541, %v539
    %v692 = vpack.c.b16 %v542, %v540
    %v693 = vpack.c.b16 %v545, %v543
    %v694 = vpack.c.b16 %v546, %v544
    %v695 = vpack.c.b16 %v549, %v547
    %v696 = vpack.c.b16 %v550, %v548
    %v697 = vpack.c.b16 %v553, %v551
    %v698 = vpack.c.b16 %v554, %v552
    %v699 = vpack.c.b16 %v557, %v555
    %v700 = vpack.c.b16 %v558, %v556
    %v701 = vpack.c.b16 %v561, %v559
    %v702 = vpack.c.b16 %v562, %v560
    %v703 = vpack.c.b16 %v565, %v563
    %v704 = vpack.c.b16 %v566, %v564
    %v705 = vpack.c.b16 %v569, %v567
    %v706 = vpack.c.b16 %v570, %v568
    %v707 = vpack.c.b16 %v573, %v571
    %v708 = vpack.c.b16 %v574, %v572
    %v709 = vpack.c.b16 %v577, %v575
    %v710 = vpack.c.b16 %v578, %v576
    %v711 = vpack.c.b16 %v581, %v579
    %v712 = vpack.c.b16 %v582, %v580
    %v713 = vpack.c.b16 %v585, %v583
    %v714 = vpack.c.b16 %v586, %v584
    %v715 = vpack.c.b16 %v589, %v587
    %v716 = vpack.c.b16 %v590, %v588
    %v717 = vpack.c.b16 %v593, %v591
    %v718 = vpack.c.b16 %v594, %v592
    %v719 = vpack.c.b16 %v597, %v595
    %v720 = vpack.c.b16 %v598, %v596
    %v721 = vpack.c.b16 %v601, %v599
    %v722 = vpack.c.b16 %v602, %v600
    %v723 = vpack.c.b16 %v605, %v603
    %v724 = vpack.c.b16 %v606, %v604
    %v725 = vpack.c.b16 %v609, %v607
    %v726 = vpack.c.b16 %v610, %v608
    %v727 = vpack.c.b16 %v613, %v611
    %v728 = vpack.c.b16 %v614, %v612
    %v729 = vpack.c.b16 %v617, %v615
    %v730 = vpack.c.b16 %v618, %v616
    %v731 = vpack.c.b16 %v621, %v619
    %v732 = vpack.c.b16 %v622, %v620
    %v733 = vpack.c.b16 %v625, %v623
    %v734 = vpack.c.b16 %v626, %v624
    %v735 = vpack.c.b16 %v629, %v627
    %v736 = vpack.c.b16 %v630, %v628
    %v737 = vpack.c.b16 %v633, %v631
    %v738 = vpack.c.b16 %v634, %v632
    %v739 = vpack.c.b16 %v637, %v635
    %v740 = vpack.c.b16 %v638, %v636
    %v741 = vpack.c.b16 %v641, %v639
    %v742 = vpack.c.b16 %v642, %v640
    %v743 = vpack.c.b16 %v645, %v643
    %v744 = vpack.c.b16 %v646, %v644
    %vm843 = vcmask 130048
    %v845 = vsel %vm843, %v343, 0
    %847 = vmatprep.subr.bf16.mxu0 %v648
    %848 = vmatpush1.bf16.msra.mxu0 %v647
    %849 = vmatprep.subr.bf16.mxu0 %v650
    %850 = vmatpush1.bf16.msra.mxu0 %v649
    %851 = vmatprep.subr.bf16.mxu0 %v652
    %852 = vmatpush1.bf16.msra.mxu0 %v651
    %853 = vmatprep.subr.bf16.mxu0 %v654
    %854 = vmatpush1.bf16.msra.mxu0 %v653
    %855 = vmatprep.subr.bf16.mxu0 %v656
    %856 = vmatpush1.bf16.msra.mxu0 %v655
    %857 = vmatprep.subr.bf16.mxu0 %v658
    %858 = vmatpush1.bf16.msra.mxu0 %v657
    %859 = vmatprep.subr.bf16.mxu0 %v660
    %860 = vmatpush1.bf16.msra.mxu0 %v659
    %861 = vmatprep.subr.bf16.mxu0 %v662
    %862 = vmatpush1.bf16.msra.mxu0 %v661
    %863 = vmatprep.subr.bf16.mxu0 %v664
    %864 = vmatpush1.bf16.msra.mxu0 %v663
    %865 = vmatprep.subr.bf16.mxu0 %v666
    %866 = vmatpush1.bf16.msra.mxu0 %v665
    %867 = vmatprep.subr.bf16.mxu0 %v668
    %868 = vmatpush1.bf16.msra.mxu0 %v667
    %869 = vmatprep.subr.bf16.mxu0 %v670
    %870 = vmatpush1.bf16.msra.mxu0 %v669
    %871 = vmatprep.subr.bf16.mxu0 %v672
    %872 = vmatpush1.bf16.msra.mxu0 %v671
    %873 = vmatprep.subr.bf16.mxu0 %v674
    %874 = vmatpush1.bf16.msra.mxu0 %v673
    %875 = vmatprep.subr.bf16.mxu0 %v676
    %876 = vmatpush1.bf16.msra.mxu0 %v675
    %877 = vmatprep.subr.bf16.mxu0 %v678
    %878 = vmatpush1.bf16.msra.mxu0 %v677
    %879 = vmatprep.mubr.bf16.mxu0 %v344
    %880 = vmatmul.mubr.bf16.gmra.mrb[0].mxu0 %v340
    %v881 = vpop.f32.mrb[0].mxu0
    %v882 = vadd.f32 %v197, %v881
    %v883 = vpop.f32.mrb[0].mxu0
    %v884 = vadd.f32 %v201, %v883
    %v885 = vpop.f32.mrb[0].mxu0
    %v886 = vadd.f32 %v197, %v885
    %v887 = vpop.f32.mrb[0].mxu0
    %v888 = vadd.f32 %v201, %v887
    %889 = vdwg.mxu0
    %890 = vmatprep.subr.bf16.mxu0 %v680
    %891 = vmatpush1.bf16.msra.mxu0 %v679
    %892 = vmatprep.subr.bf16.mxu0 %v682
    %893 = vmatpush1.bf16.msra.mxu0 %v681
    %894 = vmatprep.subr.bf16.mxu0 %v684
    %895 = vmatpush1.bf16.msra.mxu0 %v683
    %896 = vmatprep.subr.bf16.mxu0 %v686
    %897 = vmatpush1.bf16.msra.mxu0 %v685
    %898 = vmatprep.subr.bf16.mxu0 %v688
    %899 = vmatpush1.bf16.msra.mxu0 %v687
    %900 = vmatprep.subr.bf16.mxu0 %v690
    %901 = vmatpush1.bf16.msra.mxu0 %v689
    %902 = vmatprep.subr.bf16.mxu0 %v692
    %903 = vmatpush1.bf16.msra.mxu0 %v691
    %904 = vmatprep.subr.bf16.mxu0 %v694
    %905 = vmatpush1.bf16.msra.mxu0 %v693
    %906 = vmatprep.subr.bf16.mxu0 %v696
    %907 = vmatpush1.bf16.msra.mxu0 %v695
    %908 = vmatprep.subr.bf16.mxu0 %v698
    %909 = vmatpush1.bf16.msra.mxu0 %v697
    %910 = vmatprep.subr.bf16.mxu0 %v700
    %911 = vmatpush1.bf16.msra.mxu0 %v699
    %912 = vmatprep.subr.bf16.mxu0 %v702
    %913 = vmatpush1.bf16.msra.mxu0 %v701
    %914 = vmatprep.subr.bf16.mxu0 %v704
    %915 = vmatpush1.bf16.msra.mxu0 %v703
    %916 = vmatprep.subr.bf16.mxu0 %v706
    %917 = vmatpush1.bf16.msra.mxu0 %v705
    %918 = vmatprep.subr.bf16.mxu0 %v708
    %919 = vmatpush1.bf16.msra.mxu0 %v707
    %920 = vmatprep.subr.bf16.mxu0 %v710
    %921 = vmatpush1.bf16.msra.mxu0 %v709
    %922 = vmatprep.mubr.bf16.mxu0 %v345
    %923 = vmatmul.mubr.bf16.gmra.mrb[0].mxu0 %v341
    %v924 = vpop.f32.mrb[0].mxu0
    %v925 = vadd.f32 %v882, %v924
    %v926 = vpop.f32.mrb[0].mxu0
    %v927 = vadd.f32 %v884, %v926
    %v928 = vpop.f32.mrb[0].mxu0
    %v929 = vadd.f32 %v886, %v928
    %v930 = vpop.f32.mrb[0].mxu0
    %v931 = vadd.f32 %v888, %v930
    %932 = vdwg.mxu0
    %933 = vmatprep.subr.bf16.mxu0 %v712
    %934 = vmatpush1.bf16.msra.mxu0 %v711
    %935 = vmatprep.subr.bf16.mxu0 %v714
    %936 = vmatpush1.bf16.msra.mxu0 %v713
    %937 = vmatprep.subr.bf16.mxu0 %v716
    %938 = vmatpush1.bf16.msra.mxu0 %v715
    %939 = vmatprep.subr.bf16.mxu0 %v718
    %940 = vmatpush1.bf16.msra.mxu0 %v717
    %941 = vmatprep.subr.bf16.mxu0 %v720
    %942 = vmatpush1.bf16.msra.mxu0 %v719
    %943 = vmatprep.subr.bf16.mxu0 %v722
    %944 = vmatpush1.bf16.msra.mxu0 %v721
    %945 = vmatprep.subr.bf16.mxu0 %v724
    %946 = vmatpush1.bf16.msra.mxu0 %v723
    %947 = vmatprep.subr.bf16.mxu0 %v726
    %948 = vmatpush1.bf16.msra.mxu0 %v725
    %949 = vmatprep.subr.bf16.mxu0 %v728
    %950 = vmatpush1.bf16.msra.mxu0 %v727
    %951 = vmatprep.subr.bf16.mxu0 %v730
    %952 = vmatpush1.bf16.msra.mxu0 %v729
    %953 = vmatprep.subr.bf16.mxu0 %v732
    %954 = vmatpush1.bf16.msra.mxu0 %v731
    %955 = vmatprep.subr.bf16.mxu0 %v734
    %956 = vmatpush1.bf16.msra.mxu0 %v733
    %957 = vmatprep.subr.bf16.mxu0 %v736
    %958 = vmatpush1.bf16.msra.mxu0 %v735
    %959 = vmatprep.subr.bf16.mxu0 %v738
    %960 = vmatpush1.bf16.msra.mxu0 %v737
    %961 = vmatprep.subr.bf16.mxu0 %v740
    %962 = vmatpush1.bf16.msra.mxu0 %v739
    %963 = vmatprep.subr.bf16.mxu0 %v742
    %964 = vmatpush1.bf16.msra.mxu0 %v741
    %965 = vmatprep.mubr.bf16.mxu0 %v346
    %966 = vmatmul.mubr.bf16.gmra.mrb[0].mxu0 %v342
    %v967 = vpop.f32.mrb[0].mxu0
    %v968 = vadd.f32 %v925, %v967
    %v969 = vpop.f32.mrb[0].mxu0
    %v970 = vadd.f32 %v927, %v969
    %v971 = vpop.f32.mrb[0].mxu0
    %v972 = vadd.f32 %v929, %v971
    %v973 = vpop.f32.mrb[0].mxu0
    %v974 = vadd.f32 %v931, %v973
    %975 = vdwg.mxu0
    %976 = vmatprep.subr.bf16.mxu0 %v744
    %977 = vmatpush1.bf16.msra.mxu0 %v743
    %978 = vmatprep.subr.bf16.mxu0 0
    %979 = vmatpush1.bf16.msra.mxu0 0
    %980 = vmatprep.subr.bf16.mxu0 0
    %981 = vmatpush1.bf16.msra.mxu0 0
    %982 = vmatprep.subr.bf16.mxu0 0
    %983 = vmatpush1.bf16.msra.mxu0 0
    %984 = vmatprep.subr.bf16.mxu0 0
    %985 = vmatpush1.bf16.msra.mxu0 0
    %986 = vmatprep.subr.bf16.mxu0 0
    %987 = vmatpush1.bf16.msra.mxu0 0
    %988 = vmatprep.subr.bf16.mxu0 0
    %989 = vmatpush1.bf16.msra.mxu0 0
    %990 = vmatprep.subr.bf16.mxu0 0
    %991 = vmatpush1.bf16.msra.mxu0 0
    %992 = vmatprep.subr.bf16.mxu0 0
    %993 = vmatpush1.bf16.msra.mxu0 0
    %994 = vmatprep.subr.bf16.mxu0 0
    %995 = vmatpush1.bf16.msra.mxu0 0
    %996 = vmatprep.subr.bf16.mxu0 0
    %997 = vmatpush1.bf16.msra.mxu0 0
    %998 = vmatprep.subr.bf16.mxu0 0
    %999 = vmatpush1.bf16.msra.mxu0 0
    %1000 = vmatprep.subr.bf16.mxu0 0
    %1001 = vmatpush1.bf16.msra.mxu0 0
    %1002 = vmatprep.subr.bf16.mxu0 0
    %1003 = vmatpush1.bf16.msra.mxu0 0
    %1004 = vmatprep.subr.bf16.mxu0 0
    %1005 = vmatpush1.bf16.msra.mxu0 0
    %1006 = vmatprep.subr.bf16.mxu0 0
    %1007 = vmatpush1.bf16.msra.mxu0 0
    %1008 = vmatprep.mubr.bf16.mxu0 0
    %1009 = vmatmul.mubr.bf16.gmra.mrb[0].mxu0 %v845
    %v1010 = vpop.f32.mrb[0].mxu0
    %v1011 = vadd.f32 %v968, %v1010
    %v1012 = vpop.f32.mrb[0].mxu0
    %v1013 = vadd.f32 %v970, %v1012
    %v1014 = vpop.f32.mrb[0].mxu0
    %v1015 = vadd.f32 %v972, %v1014
    %v1016 = vpop.f32.mrb[0].mxu0
    %v1017 = vadd.f32 %v974, %v1016
    %1018 = vdwg.mxu0
    %v1019 = vmax.f32 %v1011, 0.0
    %v1020 = vmax.f32 %v1013, 0.0
    %v1021 = vmax.f32 %v1015, 0.0
    %v1022 = vmax.f32 %v1017, 0.0
    %v1023 = vpack.c.bf16 %v1021, %v1019
    %v1024 = vpack.c.bf16 %v1022, %v1020
    %v1025 = vld [vmem:[#allocation7] sm:$0xff]
    %v1026 = vld [vmem:[#allocation7 + $0x8] sm:$0xff]
    %v1027 = vld [vmem:[#allocation7 + $0x10] sm:$0xff]
    %v1028 = vld [vmem:[#allocation7 + $0x18] sm:$0xff]
    %v1029 = vld [vmem:[#allocation7 + $0x20] sm:$0xff]
    %v1030 = vld [vmem:[#allocation7 + $0x28] sm:$0xff]
    %v1031 = vld [vmem:[#allocation7 + $0x30] sm:$0xff]
    %v1032 = vld [vmem:[#allocation7 + $0x38] sm:$0xff]
    %v1033 = vld [vmem:[#allocation7 + $0x40] sm:$0xff]
    %v1034 = vld [vmem:[#allocation7 + $0x48] sm:$0xff]
    %v1035 = vld [vmem:[#allocation7 + $0x50] sm:$0xff]
    %v1036 = vld [vmem:[#allocation7 + $0x58] sm:$0xff]
    %v1037 = vld [vmem:[#allocation7 + $0x60] sm:$0xff]
    %v1038 = vld [vmem:[#allocation7 + $0x68] sm:$0xff]
    %v1039 = vld [vmem:[#allocation7 + $0x70] sm:$0xff]
    %v1040 = vld [vmem:[#allocation7 + $0x78] sm:$0xff]
    %v1041 = vld [vmem:[#allocation7 + $0x80] sm:$0xff]
    %v1042 = vld [vmem:[#allocation7 + $0x88] sm:$0xff]
    %v1043 = vld [vmem:[#allocation7 + $0x90] sm:$0xff]
    %v1044 = vld [vmem:[#allocation7 + $0x98] sm:$0xff]
    %v1045 = vld [vmem:[#allocation7 + $0xa0] sm:$0xff]
    %v1046 = vld [vmem:[#allocation7 + $0xa8] sm:$0xff]
    %v1047 = vld [vmem:[#allocation7 + $0xb0] sm:$0xff]
    %v1048 = vld [vmem:[#allocation7 + $0xb8] sm:$0xff]
    %v1049 = vld [vmem:[#allocation7 + $0xc0] sm:$0xff]
    %v1050 = vld [vmem:[#allocation7 + $0xc8] sm:$0xff]
    %v1051 = vld [vmem:[#allocation7 + $0xd0] sm:$0xff]
    %v1052 = vld [vmem:[#allocation7 + $0xd8] sm:$0xff]
    %v1053 = vld [vmem:[#allocation7 + $0xe0] sm:$0xff]
    %v1054 = vld [vmem:[#allocation7 + $0xe8] sm:$0xff]
    %v1055 = vld [vmem:[#allocation7 + $0xf0] sm:$0xff]
    %v1056 = vld [vmem:[#allocation7 + $0xf8] sm:$0xff]
    %v1057 = vld [vmem:[%s4] sm:$0x3]
    %v1059 = vlaneseq
    %v1060 = vshrl.u32 %v1059, 7
    %v1061 = vsub.s32 0, %v1060
    %v1062 = vrot.slane %v1057, %v1061
    %v1063 = vlaneseq
    %v1064 = vshrl.u32 %v1063, 7
    %v1065 = vsub.s32 1, %v1064
    %v1066 = vrot.slane %v1057, %v1065
    %v1101 = vunpack.c.l.b16 %v1025
    %v1102 = vunpack.c.h.b16 %v1025
    %v1103 = vunpack.c.l.b16 %v1026
    %v1104 = vunpack.c.h.b16 %v1026
    %v1105 = vunpack.c.l.b16 %v1027
    %v1106 = vunpack.c.h.b16 %v1027
    %v1107 = vunpack.c.l.b16 %v1028
    %v1108 = vunpack.c.h.b16 %v1028
    %v1109 = vunpack.c.l.b16 %v1029
    %v1110 = vunpack.c.h.b16 %v1029
    %v1111 = vunpack.c.l.b16 %v1030
    %v1112 = vunpack.c.h.b16 %v1030
    %v1113 = vunpack.c.l.b16 %v1031
    %v1114 = vunpack.c.h.b16 %v1031
    %v1115 = vunpack.c.l.b16 %v1032
    %v1116 = vunpack.c.h.b16 %v1032
    %v1117 = vunpack.c.l.b16 %v1033
    %v1118 = vunpack.c.h.b16 %v1033
    %v1119 = vunpack.c.l.b16 %v1034
    %v1120 = vunpack.c.h.b16 %v1034
    %v1121 = vunpack.c.l.b16 %v1035
    %v1122 = vunpack.c.h.b16 %v1035
    %v1123 = vunpack.c.l.b16 %v1036
    %v1124 = vunpack.c.h.b16 %v1036
    %v1125 = vunpack.c.l.b16 %v1037
    %v1126 = vunpack.c.h.b16 %v1037
    %v1127 = vunpack.c.l.b16 %v1038
    %v1128 = vunpack.c.h.b16 %v1038
    %v1129 = vunpack.c.l.b16 %v1039
    %v1130 = vunpack.c.h.b16 %v1039
    %v1131 = vunpack.c.l.b16 %v1040
    %v1132 = vunpack.c.h.b16 %v1040
    %v1133 = vunpack.c.l.b16 %v1041
    %v1134 = vunpack.c.h.b16 %v1041
    %v1135 = vunpack.c.l.b16 %v1042
    %v1136 = vunpack.c.h.b16 %v1042
    %v1137 = vunpack.c.l.b16 %v1043
    %v1138 = vunpack.c.h.b16 %v1043
    %v1139 = vunpack.c.l.b16 %v1044
    %v1140 = vunpack.c.h.b16 %v1044
    %v1141 = vunpack.c.l.b16 %v1045
    %v1142 = vunpack.c.h.b16 %v1045
    %v1143 = vunpack.c.l.b16 %v1046
    %v1144 = vunpack.c.h.b16 %v1046
    %v1145 = vunpack.c.l.b16 %v1047
    %v1146 = vunpack.c.h.b16 %v1047
    %v1147 = vunpack.c.l.b16 %v1048
    %v1148 = vunpack.c.h.b16 %v1048
    %v1149 = vunpack.c.l.b16 %v1049
    %v1150 = vunpack.c.h.b16 %v1049
    %v1151 = vunpack.c.l.b16 %v1050
    %v1152 = vunpack.c.h.b16 %v1050
    %v1153 = vunpack.c.l.b16 %v1051
    %v1154 = vunpack.c.h.b16 %v1051
    %v1155 = vunpack.c.l.b16 %v1052
    %v1156 = vunpack.c.h.b16 %v1052
    %v1157 = vunpack.c.l.b16 %v1053
    %v1158 = vunpack.c.h.b16 %v1053
    %v1159 = vunpack.c.l.b16 %v1054
    %v1160 = vunpack.c.h.b16 %v1054
    %v1161 = vunpack.c.l.b16 %v1055
    %v1162 = vunpack.c.h.b16 %v1055
    %v1163 = vunpack.c.l.b16 %v1056
    %v1164 = vunpack.c.h.b16 %v1056
    %v1165 = vpack.c.b16 %v1103, %v1101
    %v1166 = vpack.c.b16 %v1104, %v1102
    %v1167 = vpack.c.b16 %v1107, %v1105
    %v1168 = vpack.c.b16 %v1108, %v1106
    %v1169 = vpack.c.b16 %v1111, %v1109
    %v1170 = vpack.c.b16 %v1112, %v1110
    %v1171 = vpack.c.b16 %v1115, %v1113
    %v1172 = vpack.c.b16 %v1116, %v1114
    %v1173 = vpack.c.b16 %v1119, %v1117
    %v1174 = vpack.c.b16 %v1120, %v1118
    %v1175 = vpack.c.b16 %v1123, %v1121
    %v1176 = vpack.c.b16 %v1124, %v1122
    %v1177 = vpack.c.b16 %v1127, %v1125
    %v1178 = vpack.c.b16 %v1128, %v1126
    %v1179 = vpack.c.b16 %v1131, %v1129
    %v1180 = vpack.c.b16 %v1132, %v1130
    %v1181 = vpack.c.b16 %v1135, %v1133
    %v1182 = vpack.c.b16 %v1136, %v1134
    %v1183 = vpack.c.b16 %v1139, %v1137
    %v1184 = vpack.c.b16 %v1140, %v1138
    %v1185 = vpack.c.b16 %v1143, %v1141
    %v1186 = vpack.c.b16 %v1144, %v1142
    %v1187 = vpack.c.b16 %v1147, %v1145
    %v1188 = vpack.c.b16 %v1148, %v1146
    %v1189 = vpack.c.b16 %v1151, %v1149
    %v1190 = vpack.c.b16 %v1152, %v1150
    %v1191 = vpack.c.b16 %v1155, %v1153
    %v1192 = vpack.c.b16 %v1156, %v1154
    %v1193 = vpack.c.b16 %v1159, %v1157
    %v1194 = vpack.c.b16 %v1160, %v1158
    %v1195 = vpack.c.b16 %v1163, %v1161
    %v1196 = vpack.c.b16 %v1164, %v1162
    %1229 = vmatprep.subr.bf16.mxu0 %v1166
    %1230 = vmatpush1.bf16.msra.mxu0 %v1165
    %1231 = vmatprep.subr.bf16.mxu0 %v1168
    %1232 = vmatpush1.bf16.msra.mxu0 %v1167
    %1233 = vmatprep.subr.bf16.mxu0 %v1170
    %1234 = vmatpush1.bf16.msra.mxu0 %v1169
    %1235 = vmatprep.subr.bf16.mxu0 %v1172
    %1236 = vmatpush1.bf16.msra.mxu0 %v1171
    %1237 = vmatprep.subr.bf16.mxu0 %v1174
    %1238 = vmatpush1.bf16.msra.mxu0 %v1173
    %1239 = vmatprep.subr.bf16.mxu0 %v1176
    %1240 = vmatpush1.bf16.msra.mxu0 %v1175
    %1241 = vmatprep.subr.bf16.mxu0 %v1178
    %1242 = vmatpush1.bf16.msra.mxu0 %v1177
    %1243 = vmatprep.subr.bf16.mxu0 %v1180
    %1244 = vmatpush1.bf16.msra.mxu0 %v1179
    %1245 = vmatprep.subr.bf16.mxu0 %v1182
    %1246 = vmatpush1.bf16.msra.mxu0 %v1181
    %1247 = vmatprep.subr.bf16.mxu0 %v1184
    %1248 = vmatpush1.bf16.msra.mxu0 %v1183
    %1249 = vmatprep.subr.bf16.mxu0 %v1186
    %1250 = vmatpush1.bf16.msra.mxu0 %v1185
    %1251 = vmatprep.subr.bf16.mxu0 %v1188
    %1252 = vmatpush1.bf16.msra.mxu0 %v1187
    %1253 = vmatprep.subr.bf16.mxu0 %v1190
    %1254 = vmatpush1.bf16.msra.mxu0 %v1189
    %1255 = vmatprep.subr.bf16.mxu0 %v1192
    %1256 = vmatpush1.bf16.msra.mxu0 %v1191
    %1257 = vmatprep.subr.bf16.mxu0 %v1194
    %1258 = vmatpush1.bf16.msra.mxu0 %v1193
    %1259 = vmatprep.subr.bf16.mxu0 %v1196
    %1260 = vmatpush1.bf16.msra.mxu0 %v1195
    %1261 = vmatprep.mubr.bf16.mxu0 %v1024
    %1262 = vmatmul.mubr.bf16.gmra.mrb[0].mxu0 %v1023
    %v1263 = vpop.f32.mrb[0].mxu0
    %v1264 = vadd.f32 %v1062, %v1263
    %v1265 = vpop.f32.mrb[0].mxu0
    %v1266 = vadd.f32 %v1066, %v1265
    %v1267 = vpop.f32.mrb[0].mxu0
    %v1268 = vadd.f32 %v1062, %v1267
    %v1269 = vpop.f32.mrb[0].mxu0
    %v1270 = vadd.f32 %v1066, %v1269
    %1271 = vdwg.mxu0
    %v1272 = vmax.f32 %v1264, 0.0
    %v1273 = vmax.f32 %v1266, 0.0
    %v1274 = vmax.f32 %v1268, 0.0
    %v1275 = vmax.f32 %v1270, 0.0
    %v1276 = vpack.c.bf16 %v1274, %v1272
    %v1277 = vpack.c.bf16 %v1275, %v1273
    %v1278 = vld [vmem:[#allocation8] sm:$0xf]
    %v1279 = vld [vmem:[#allocation8 + $0x4] sm:$0xf]
    %v1280 = vld [vmem:[#allocation8 + $0x8] sm:$0xf]
    %v1281 = vld [vmem:[#allocation8 + $0xc] sm:$0xf]
    %v1282 = vld [vmem:[#allocation8 + $0x10] sm:$0xf]
    %v1283 = vld [vmem:[#allocation8 + $0x14] sm:$0xf]
    %v1284 = vld [vmem:[#allocation8 + $0x18] sm:$0xf]
    %v1285 = vld [vmem:[#allocation8 + $0x1c] sm:$0xf]
    %v1286 = vld [vmem:[#allocation8 + $0x20] sm:$0xf]
    %v1287 = vld [vmem:[#allocation8 + $0x24] sm:$0xf]
    %v1288 = vld [vmem:[#allocation8 + $0x28] sm:$0xf]
    %v1289 = vld [vmem:[#allocation8 + $0x2c] sm:$0xf]
    %v1290 = vld [vmem:[#allocation8 + $0x30] sm:$0xf]
    %v1291 = vld [vmem:[#allocation8 + $0x34] sm:$0xf]
    %v1292 = vld [vmem:[#allocation8 + $0x38] sm:$0xf]
    %v1293 = vld [vmem:[#allocation8 + $0x3c] sm:$0xf]
    %v1294 = vld [vmem:[#allocation8 + $0x40] sm:$0xf]
    %v1295 = vld [vmem:[#allocation8 + $0x44] sm:$0xf]
    %v1296 = vld [vmem:[#allocation8 + $0x48] sm:$0xf]
    %v1297 = vld [vmem:[#allocation8 + $0x4c] sm:$0xf]
    %v1298 = vld [vmem:[#allocation8 + $0x50] sm:$0xf]
    %v1299 = vld [vmem:[#allocation8 + $0x54] sm:$0xf]
    %v1300 = vld [vmem:[#allocation8 + $0x58] sm:$0xf]
    %v1301 = vld [vmem:[#allocation8 + $0x5c] sm:$0xf]
    %v1302 = vld [vmem:[#allocation8 + $0x60] sm:$0xf]
    %v1303 = vld [vmem:[#allocation8 + $0x64] sm:$0xf]
    %v1304 = vld [vmem:[#allocation8 + $0x68] sm:$0xf]
    %v1305 = vld [vmem:[#allocation8 + $0x6c] sm:$0xf]
    %v1306 = vld [vmem:[#allocation8 + $0x70] sm:$0xf]
    %v1307 = vld [vmem:[#allocation8 + $0x74] sm:$0xf]
    %v1308 = vld [vmem:[#allocation8 + $0x78] sm:$0xf]
    %v1309 = vld [vmem:[#allocation8 + $0x7c] sm:$0xf]
    %v1310 = vld [vmem:[%s6] sm:$0x1]
    %v1312 = vlaneseq
    %v1313 = vshrl.u32 %v1312, 7
    %v1314 = vsub.s32 0, %v1313
    %v1315 = vrot.slane %v1310, %v1314
    %v1349 = vunpack.c.l.b16 %v1278
    %v1350 = vunpack.c.l.b16 %v1279
    %v1351 = vunpack.c.l.b16 %v1280
    %v1352 = vunpack.c.l.b16 %v1281
    %v1353 = vunpack.c.l.b16 %v1282
    %v1354 = vunpack.c.l.b16 %v1283
    %v1355 = vunpack.c.l.b16 %v1284
    %v1356 = vunpack.c.l.b16 %v1285
    %v1357 = vunpack.c.l.b16 %v1286
    %v1358 = vunpack.c.l.b16 %v1287
    %v1359 = vunpack.c.l.b16 %v1288
    %v1360 = vunpack.c.l.b16 %v1289
    %v1361 = vunpack.c.l.b16 %v1290
    %v1362 = vunpack.c.l.b16 %v1291
    %v1363 = vunpack.c.l.b16 %v1292
    %v1364 = vunpack.c.l.b16 %v1293
    %v1365 = vunpack.c.l.b16 %v1294
    %v1366 = vunpack.c.l.b16 %v1295
    %v1367 = vunpack.c.l.b16 %v1296
    %v1368 = vunpack.c.l.b16 %v1297
    %v1369 = vunpack.c.l.b16 %v1298
    %v1370 = vunpack.c.l.b16 %v1299
    %v1371 = vunpack.c.l.b16 %v1300
    %v1372 = vunpack.c.l.b16 %v1301
    %v1373 = vunpack.c.l.b16 %v1302
    %v1374 = vunpack.c.l.b16 %v1303
    %v1375 = vunpack.c.l.b16 %v1304
    %v1376 = vunpack.c.l.b16 %v1305
    %v1377 = vunpack.c.l.b16 %v1306
    %v1378 = vunpack.c.l.b16 %v1307
    %v1379 = vunpack.c.l.b16 %v1308
    %v1380 = vunpack.c.l.b16 %v1309
    %v1381 = vpack.c.b16 %v1350, %v1349
    %v1382 = vpack.c.b16 %v1352, %v1351
    %v1383 = vpack.c.b16 %v1354, %v1353
    %v1384 = vpack.c.b16 %v1356, %v1355
    %v1385 = vpack.c.b16 %v1358, %v1357
    %v1386 = vpack.c.b16 %v1360, %v1359
    %v1387 = vpack.c.b16 %v1362, %v1361
    %v1388 = vpack.c.b16 %v1364, %v1363
    %v1389 = vpack.c.b16 %v1366, %v1365
    %v1390 = vpack.c.b16 %v1368, %v1367
    %v1391 = vpack.c.b16 %v1370, %v1369
    %v1392 = vpack.c.b16 %v1372, %v1371
    %v1393 = vpack.c.b16 %v1374, %v1373
    %v1394 = vpack.c.b16 %v1376, %v1375
    %v1395 = vpack.c.b16 %v1378, %v1377
    %v1396 = vpack.c.b16 %v1380, %v1379
    %1413 = vmatprep.subr.bf16.mxu0 0
    %1414 = vmatpush1.bf16.msra.mxu0 %v1381
    %1415 = vmatprep.subr.bf16.mxu0 0
    %1416 = vmatpush1.bf16.msra.mxu0 %v1382
    %1417 = vmatprep.subr.bf16.mxu0 0
    %1418 = vmatpush1.bf16.msra.mxu0 %v1383
    %1419 = vmatprep.subr.bf16.mxu0 0
    %1420 = vmatpush1.bf16.msra.mxu0 %v1384
    %1421 = vmatprep.subr.bf16.mxu0 0
    %1422 = vmatpush1.bf16.msra.mxu0 %v1385
    %1423 = vmatprep.subr.bf16.mxu0 0
    %1424 = vmatpush1.bf16.msra.mxu0 %v1386
    %1425 = vmatprep.subr.bf16.mxu0 0
    %1426 = vmatpush1.bf16.msra.mxu0 %v1387
    %1427 = vmatprep.subr.bf16.mxu0 0
    %1428 = vmatpush1.bf16.msra.mxu0 %v1388
    %1429 = vmatprep.subr.bf16.mxu0 0
    %1430 = vmatpush1.bf16.msra.mxu0 %v1389
    %1431 = vmatprep.subr.bf16.mxu0 0
    %1432 = vmatpush1.bf16.msra.mxu0 %v1390
    %1433 = vmatprep.subr.bf16.mxu0 0
    %1434 = vmatpush1.bf16.msra.mxu0 %v1391
    %1435 = vmatprep.subr.bf16.mxu0 0
    %1436 = vmatpush1.bf16.msra.mxu0 %v1392
    %1437 = vmatprep.subr.bf16.mxu0 0
    %1438 = vmatpush1.bf16.msra.mxu0 %v1393
    %1439 = vmatprep.subr.bf16.mxu0 0
    %1440 = vmatpush1.bf16.msra.mxu0 %v1394
    %1441 = vmatprep.subr.bf16.mxu0 0
    %1442 = vmatpush1.bf16.msra.mxu0 %v1395
    %1443 = vmatprep.subr.bf16.mxu0 0
    %1444 = vmatpush1.bf16.msra.mxu0 %v1396
    %1445 = vmatprep.mubr.bf16.mxu0 %v1277
    %1446 = vmatmul.mubr.bf16.gmra.mrb[0].mxu0 %v1276
    %v1447 = vpop.f32.mrb[0].mxu0
    %v1448 = vadd.f32 %v1315, %v1447
    %v1449 = vpop.f32.mrb[0].mxu0
    %v1450 = vpop.f32.mrb[0].mxu0
    %v1451 = vadd.f32 %v1315, %v1450
    %v1452 = vpop.f32.mrb[0].mxu0
    %1453 = vdwg.mxu0
    %1454 = vst [vmem:[#allocation10] sm:$0xff] %v1448
    %1455 = vst [vmem:[#allocation10 + $0x8] sm:$0xff] %v1451
    %v1460 = vcombine.low %v1272, %v1273
    %v1461 = vcombine.high %v1272, %v1273
    %v1463 = vunpack.c.l.s4 1983009808
    %v1464 = vunpack.c.0.s8 %v1463
    %v1465 = vlaneseq
    %v1466 = vshrl.u32 %v1465, 7
    %v1467 = vsub.s32 %v1464, %v1466
    %v1468 = vrot.slane %v1460, %v1467
    %v1470 = vunpack.c.l.s4 1983009808
    %v1471 = vunpack.c.0.s8 %v1470
    %v1472 = vlaneseq
    %v1473 = vshrl.u32 %v1472, 7
    %v1474 = vsub.s32 %v1471, %v1473
    %v1475 = vrot.slane %v1461, %v1474
    %v1476 = vcombine.high %v1468, %v1468
    %v1477 = vcombine.high %v1475, %v1475
    %v1478 = vcombine.low %v1274, %v1275
    %v1479 = vcombine.high %v1274, %v1275
    %v1481 = vunpack.c.l.s4 1983009808
    %v1482 = vunpack.c.0.s8 %v1481
    %v1483 = vlaneseq
    %v1484 = vshrl.u32 %v1483, 7
    %v1485 = vsub.s32 %v1482, %v1484
    %v1486 = vrot.slane %v1478, %v1485
    %v1488 = vunpack.c.l.s4 1983009808
    %v1489 = vunpack.c.0.s8 %v1488
    %v1490 = vlaneseq
    %v1491 = vshrl.u32 %v1490, 7
    %v1492 = vsub.s32 %v1489, %v1491
    %v1493 = vrot.slane %v1479, %v1492
    %v1494 = vcombine.high %v1486, %v1486
    %v1495 = vcombine.high %v1493, %v1493
    %1504 = vst [vmem:[#allocation11] sm:$0xf] %v1468
    %1505 = vst [vmem:[#allocation11 + $0x4] sm:$0xf] %v1476
    %1506 = vst [vmem:[#allocation11 + $0x8] sm:$0xf] %v1475
    %1507 = vst [vmem:[#allocation11 + $0xc] sm:$0xf] %v1477
    %1508 = vst [vmem:[#allocation11 + $0x10] sm:$0xf] %v1486
    %1509 = vst [vmem:[#allocation11 + $0x14] sm:$0xf] %v1494
    %1510 = vst [vmem:[#allocation11 + $0x18] sm:$0xf] %v1493
    %1511 = vst [vmem:[#allocation11 + $0x1c] sm:$0xf] %v1495
    // Predicated region
    $region46: #{tpu_custom_call.1} parent=1 // pred_check
      _
    $region47: #{tpu_custom_call.1} parent=1 // pred_check_branch
      %1513 = sbr.rel (0) target = $region49
    $region48: #{tpu_custom_call.1} parent=1 // pred_region
      %s1515 = ssub.s32 256, 32
      %1516 = vsyncadd [#allocation4], %s1515
      %s1517 = sshll.u32 [#allocation10], 4
      %s1518 = int_to_ptr.vmem [resolvable:$true] %s1517
      %1523 = dma.vmem_to_hbm [thread:$0]  %s1518, 32, %s7, [#allocation4], 32, 32, 2
    $region49: #{tpu_custom_call.1} parent=1 // pred_fallthru
      _
    // Predicated region
    $region50: #{tpu_custom_call.1} parent=1 // pred_check
      _
    $region51: #{tpu_custom_call.1} parent=1 // pred_check_branch
      %1525 = sbr.rel (0) target = $region53
    $region52: #{tpu_custom_call.1} parent=1 // pred_region
      %s1527 = ssub.s32 512, 64
      %1528 = vsyncadd [#allocation12], %s1527
      %s1529 = sshll.u32 [#allocation11], 4
      %s1530 = int_to_ptr.vmem [resolvable:$true] %s1529
      %1535 = dma.vmem_to_hbm [thread:$0]  %s1530, 64, %s8, [#allocation12], 64, 64, 4
    $region53: #{tpu_custom_call.1} parent=1 // pred_fallthru
      _
    // Predicated region
    $region54: #{tpu_custom_call.1} parent=1 // pred_check
      _
    $region55: #{tpu_custom_call.1} parent=1 // pred_check_branch
      %1537 = sbr.rel (0) target = $region57
    $region56: #{tpu_custom_call.1} parent=1 // pred_region
      %1538 = dma.done [#allocation4], 256
    $region57: #{tpu_custom_call.1} parent=1 // pred_fallthru
      _
    // Predicated region
    $region58: #{tpu_custom_call.1} parent=1 // pred_check
      _
    $region59: #{tpu_custom_call.1} parent=1 // pred_check_branch
      %1540 = sbr.rel (0) target = $region61
    $region60: #{tpu_custom_call.1} parent=1 // pred_region
      %1541 = dma.done [#allocation12], 512
    $region61: #{tpu_custom_call.1} parent=1 // pred_fallthru
      _
    %1542 = vsyncpa [#allocation3], 1
    %1543 = vsyncpa [#allocation6], 1
    %1544 = vsyncpa [#allocation9], 1
    %1545 = vsyncpa [#allocation4], 1
    %1546 = vsyncpa [#allocation12], 1

</llo_original>
